<compile_context>
chip_gen: v7x
topology: tpu7x:2x2x1
jax: 0.10.0
libtpu: 0.0.40
codegen_flags: <defaults>
</compile_context>

<pallas_src>
import jax
import jax.numpy as jnp
from jax.experimental import pallas as pl
from jax.experimental.pallas import tpu as pltpu

N_ACTION_SPACE = 2
N_STATES = 35
N_IN = N_STATES + N_ACTION_SPACE          # 37 meaningful input lanes
NETWORK_WIDTH = 128
HALF_WIDTH = NETWORK_WIDTH // 2           # 64


def _round_up(x, m):
    return (x + m - 1) // m * m


# ---- weight-slab row layout (all section starts 8-aligned) -------------------
_ROW_WS1 = 0                                   # fc_s1 weight [35,128]; rows 35..39 zero
_ROW_WS2 = _round_up(N_STATES, 8)              # 40 : fc_s2 weight [128,64] in lanes 0:64 (64:128 zero)
_ROW_W2 = _ROW_WS2 + NETWORK_WIDTH             # 168: fc2   weight [128,64] in lanes 0:64
_W_SLAB_ROWS = _ROW_W2 + NETWORK_WIDTH         # 296
_IN_COLS = _ROW_WS2                            # 40: fused-input width (state|action|zeros)

# ---- bias/small-weight slab rows (one 8x128 f32 tile = 4 KiB) ----------------
_B_BS1 = 0     # fc_s1 bias, all 128 lanes
_B_BCAT = 1    # lanes 0:64 = fc_s2 bias, lanes 64:128 = fc_a1 bias
_B_WA1_0 = 2   # fc_a1 weight row 0 in lanes 64:128 (lanes 0:64 zero)
_B_WA1_1 = 3   # fc_a1 weight row 1 in lanes 64:128
_B_B2 = 4      # fc2 bias, lanes 0:64
_B_W3 = 5      # fc3 weight (as a row), lanes 0:64
_B_B3 = 6      # fc3 bias, lane 0


def q_forward_kernel(x_ref, w_ref, b_ref, out_ref):
    xin = x_ref[...]                                   # (TB, 40) = [state|action|0]

    # s = relu(fc_s1(state)) : K=40 MXU push; weight rows 35..39 are zero so the
    # action / pad lanes contribute nothing (no lane slicing of the input).
    s = jnp.dot(xin, w_ref[0:_IN_COLS, :], preferred_element_type=jnp.float32)
    s = jnp.maximum(s + b_ref[_B_BS1:_B_BS1 + 1, :], 0.0)            # (TB, 128)

    # Fused fc_s2 / fc_a1 pre-activation over all 128 lanes:
    #   lanes 0:64   = fc_s2(s) pre-act (ws2 slab zero in lanes 64:128)
    #   lanes 64:128 = fc_a1(action) pre-act via two broadcast FMAs (VPU)
    # One relu yields cat(relu(fc_s2(s)), relu(fc_a1(a))) -- no lane concat.
    pre = jnp.dot(s, w_ref[_ROW_WS2:_ROW_WS2 + NETWORK_WIDTH, :],
                  preferred_element_type=jnp.float32)                # (TB, 128)
    a0 = xin[:, N_STATES:N_STATES + 1]                               # (TB, 1)
    a1 = xin[:, N_STATES + 1:N_STATES + 2]                           # (TB, 1)
    pre = (pre
           + a0 * b_ref[_B_WA1_0:_B_WA1_0 + 1, :]
           + a1 * b_ref[_B_WA1_1:_B_WA1_1 + 1, :]
           + b_ref[_B_BCAT:_B_BCAT + 1, :])
    cat = jnp.maximum(pre, 0.0)                                      # (TB, 128)

    # x = relu(fc2(cat(s, a))) : single K=128 MXU push
    x = jnp.dot(cat, w_ref[_ROW_W2:_ROW_W2 + NETWORK_WIDTH, 0:HALF_WIDTH],
                preferred_element_type=jnp.float32)
    x = jnp.maximum(x + b_ref[_B_B2:_B_B2 + 1, 0:HALF_WIDTH], 0.0)   # (TB, 64)

    # fc3 with the batch landing in LANES (lane-dense output row): contract the
    # 64 features of x against w3 with an NT dot -> (8, TB), keep row 0.
    w3 = jnp.broadcast_to(b_ref[_B_W3:_B_W3 + 1, 0:HALF_WIDTH], (8, HALF_WIDTH))
    q = jax.lax.dot_general(w3, x, (((1,), (1,)), ((), ())),
                            preferred_element_type=jnp.float32)      # (8, TB)
    b3 = b_ref[_B_B3:_B_B3 + 1, 0:1]                                 # (1, 1)
    out_ref[...] = (q[0:1, :] + b3).astype(out_ref.dtype)            # (1, TB)


def pack_params(params):
    """Fuse the 10 per-layer tensors into 2 contiguous f32 slabs (do this once)."""
    w = jnp.zeros((_W_SLAB_ROWS, NETWORK_WIDTH), jnp.float32)
    w = w.at[_ROW_WS1:_ROW_WS1 + N_STATES, :].set(params["ws1"])
    w = w.at[_ROW_WS2:_ROW_WS2 + NETWORK_WIDTH, 0:HALF_WIDTH].set(params["ws2"])
    w = w.at[_ROW_W2:_ROW_W2 + NETWORK_WIDTH, 0:HALF_WIDTH].set(params["w2"])

    b = jnp.zeros((8, NETWORK_WIDTH), jnp.float32)
    b = b.at[_B_BS1, :].set(params["bs1"][0])
    b = b.at[_B_BCAT, 0:HALF_WIDTH].set(params["bs2"][0])
    b = b.at[_B_BCAT, HALF_WIDTH:].set(params["ba1"][0])
    b = b.at[_B_WA1_0, HALF_WIDTH:].set(params["wa1"][0])
    b = b.at[_B_WA1_1, HALF_WIDTH:].set(params["wa1"][1])
    b = b.at[_B_B2, 0:HALF_WIDTH].set(params["b2"][0])
    b = b.at[_B_W3, 0:HALF_WIDTH].set(params["w3"][:, 0])
    b = b.at[_B_B3, 0].set(params["b3"][0, 0])
    return w, b


def q_forward(state, action, w_slab, bias_slab, *, tile_b=1024):
    """state: [B, ...] (flattened to [B, n_states]), action: [B, n_action]."""
    B = state.shape[0]
    state = state.reshape(B, -1).astype(jnp.float32)    # torch.flatten(start_dim=1)
    action = action.reshape(B, -1).astype(jnp.float32)
    assert state.shape[1] == N_STATES, state.shape
    assert action.shape[1] == N_ACTION_SPACE, action.shape

    # Single fused input: halves the per-step input DMA descriptors.
    xin = jnp.concatenate([state, action], axis=1)       # (B, 37)

    # Batch tile: multiple of 8 sublanes, large enough to amortize ~0.35us/step.
    tb = _round_up(min(int(tile_b), _round_up(B, 8)), 8)
    bp = _round_up(B, tb)
    # Keep grid >= 2 for non-tiny batches so v7x can shard both TensorCores.
    if bp // tb == 1 and tb >= 256:
        tb = _round_up(tb // 2, 8)
        bp = _round_up(B, tb)
    grid = bp // tb

    # Pad batch rows to the grid and pad lanes 37..39 with zeros (8-aligned K).
    xin = jnp.pad(xin, ((0, bp - B), (0, _IN_COLS - N_IN)))   # (bp, 40)

    flops = 2 * bp * (_IN_COLS * NETWORK_WIDTH
                      + NETWORK_WIDTH * NETWORK_WIDTH
                      + NETWORK_WIDTH * HALF_WIDTH
                      + 8 * HALF_WIDTH)
    bytes_accessed = 4 * (xin.size + w_slab.size + bias_slab.size + bp)

    out = pl.pallas_call(
        q_forward_kernel,
        out_shape=jax.ShapeDtypeStruct((grid, tb), jnp.float32),
        grid=(grid,),
        in_specs=[
            pl.BlockSpec((tb, _IN_COLS), lambda i: (i, 0)),
            # Weight slabs: constant index_map -> fetched once, VMEM-resident.
            pl.BlockSpec((_W_SLAB_ROWS, NETWORK_WIDTH), lambda i: (0, 0)),
            pl.BlockSpec((8, NETWORK_WIDTH), lambda i: (0, 0)),
        ],
        # Lane-dense output: one (1, tb) row per grid step (unmasked stores).
        out_specs=pl.BlockSpec((1, tb), lambda i: (i, 0)),
        compiler_params=pltpu.CompilerParams(
            dimension_semantics=("parallel",)),   # lets v7x shard batch over 2 TCs
        cost_estimate=pl.CostEstimate(
            flops=flops, transcendentals=0, bytes_accessed=bytes_accessed),
    )(xin, w_slab, bias_slab)
    return out.reshape(bp, 1)[:B]


def init_params(key):
    """Deterministic synthetic parameters matching nn.Linear shapes.

    Weights stored transposed ([in, out]); biases as [1, out].
    """
    ks = jax.random.split(key, 10)

    def linear(kw, kb, fan_in, fan_out):
        bound = 1.0 / jnp.sqrt(jnp.float32(fan_in))
        w = jax.random.uniform(kw, (fan_in, fan_out), jnp.float32, -bound, bound)
        b = jax.random.uniform(kb, (1, fan_out), jnp.float32, -bound, bound)
        return w, b

    wa1, ba1 = linear(ks[0], ks[1], N_ACTION_SPACE, HALF_WIDTH)
    ws1, bs1 = linear(ks[2], ks[3], N_STATES, NETWORK_WIDTH)
    ws2, bs2 = linear(ks[4], ks[5], NETWORK_WIDTH, HALF_WIDTH)
    w2, b2 = linear(ks[6], ks[7], NETWORK_WIDTH, HALF_WIDTH)
    w3, b3 = linear(ks[8], ks[9], HALF_WIDTH, 1)

    return {"wa1": wa1, "ba1": ba1, "ws1": ws1, "bs1": bs1,
            "ws2": ws2, "bs2": bs2, "w2": w2, "b2": b2, "w3": w3, "b3": b3}


def q_forward_ref(state, action, params):
    """Pure-JAX reference mirroring the torch forward."""
    B = state.shape[0]
    s = state.reshape(B, -1)
    a = jnp.maximum(action @ params["wa1"] + params["ba1"], 0.0)
    s = jnp.maximum(s @ params["ws1"] + params["bs1"], 0.0)
    s = jnp.maximum(s @ params["ws2"] + params["bs2"], 0.0)
    x = jnp.concatenate([s, a], axis=1)
    x = jnp.maximum(x @ params["w2"] + params["b2"], 0.0)
    return x @ params["w3"] + params["b3"]


if __name__ == "__main__":
    key = jax.random.PRNGKey(0)
    k_param, k_state, k_action = jax.random.split(key, 3)

    params = init_params(k_param)
    w_slab, bias_slab = pack_params(params)   # packed once, reused every call

    # Small smoke test (single grid step).
    B = 8
    state = jax.random.normal(k_state, (B, N_STATES), jnp.float32)
    action = jax.random.normal(k_action, (B, N_ACTION_SPACE), jnp.float32)
    out = jax.block_until_ready(q_forward(state, action, w_slab, bias_slab))
    ref = q_forward_ref(state, action, params)
    assert out.shape == (B, 1), out.shape
    assert jnp.allclose(out, ref, atol=1e-4, rtol=1e-4), (out, ref)

    # Multi-tile test: exercises grid > 1, batch padding, lane-dense writeback.
    B2 = 40
    state2 = jax.random.normal(jax.random.PRNGKey(1), (B2, N_STATES), jnp.float32)
    action2 = jax.random.normal(jax.random.PRNGKey(2), (B2, N_ACTION_SPACE), jnp.float32)
    out2 = jax.block_until_ready(
        q_forward(state2, action2, w_slab, bias_slab, tile_b=16))
    ref2 = q_forward_ref(state2, action2, params)
    assert out2.shape == (B2, 1), out2.shape
    assert jnp.allclose(out2, ref2, atol=1e-4, rtol=1e-4), (out2, ref2)

    print("KERNEL_OK")
</pallas_src>

<mosaic_0001>
module attributes {stable_mosaic.version = 11 : i64} {
  func.func @q_forward_kernel(%arg0: i32, %arg1: memref<8x40xf32, #tpu.memory_space<vmem>>, %arg2: memref<296x128xf32, #tpu.memory_space<vmem>>, %arg3: memref<8x128xf32, #tpu.memory_space<vmem>>, %arg4: memref<1x8xf32, #tpu.memory_space<vmem>>) attributes {dimension_semantics = [#tpu.dimension_semantics<parallel>], iteration_bounds = array<i64: 1>, scalar_prefetch = 0 : i64, scratch_operands = 0 : i64, tpu.core_type = #tpu.core_type<tc>, window_params = [{transform_indices = @transform_0, window_bounds = array<i64: 8, 40>}, {pipeline_mode = #tpu.pipeline_mode<synchronous>, transform_indices = @transform_1, window_bounds = array<i64: 296, 128>}, {pipeline_mode = #tpu.pipeline_mode<synchronous>, transform_indices = @transform_2, window_bounds = array<i64: 8, 128>}, {transform_indices = @transform_3, window_bounds = array<i64: 1, 8>}]} {
    %c0 = arith.constant 0 : index
    %c0_0 = arith.constant 0 : index
    %0 = vector.load %arg1[%c0, %c0_0] : memref<8x40xf32, #tpu.memory_space<vmem>>, vector<8x40xf32>
    %c0_1 = arith.constant 0 : index
    %c0_2 = arith.constant 0 : index
    %1 = vector.load %arg2[%c0_1, %c0_2] : memref<296x128xf32, #tpu.memory_space<vmem>>, vector<40x128xf32>
    %cst = arith.constant dense<0.000000e+00> : vector<8x128xf32>
    %2 = tpu.matmul %0, %1, %cst {dimension_numbers = #tpu.dot_dimension_numbers<[1], [0], [0], [1], [0, 0, 1, 1], [], []>} : vector<8x40xf32>, vector<40x128xf32>, vector<8x128xf32> -> vector<8x128xf32>
    %c0_3 = arith.constant 0 : index
    %c0_4 = arith.constant 0 : index
    %3 = vector.load %arg3[%c0_3, %c0_4] : memref<8x128xf32, #tpu.memory_space<vmem>>, vector<1x128xf32>
    %4 = vector.broadcast %3 : vector<1x128xf32> to vector<8x128xf32>
    %5 = arith.addf %2, %4 : vector<8x128xf32>
    %cst_5 = arith.constant 0.000000e+00 : f32
    %6 = vector.broadcast %cst_5 : f32 to vector<8x128xf32>
    %7 = arith.maximumf %5, %6 : vector<8x128xf32>
    %c40 = arith.constant 40 : index
    %c0_6 = arith.constant 0 : index
    %8 = vector.load %arg2[%c40, %c0_6] : memref<296x128xf32, #tpu.memory_space<vmem>>, vector<128x128xf32>
    %cst_7 = arith.constant dense<0.000000e+00> : vector<8x128xf32>
    %9 = tpu.matmul %7, %8, %cst_7 {dimension_numbers = #tpu.dot_dimension_numbers<[1], [0], [0], [1], [0, 0, 1, 1], [], []>} : vector<8x128xf32>, vector<128x128xf32>, vector<8x128xf32> -> vector<8x128xf32>
    %10 = vector.extract_strided_slice %0 {offsets = [0, 35], sizes = [8, 1], strides = [1, 1]} : vector<8x40xf32> to vector<8x1xf32>
    %11 = vector.extract_strided_slice %0 {offsets = [0, 36], sizes = [8, 1], strides = [1, 1]} : vector<8x40xf32> to vector<8x1xf32>
    %c2 = arith.constant 2 : index
    %c0_8 = arith.constant 0 : index
    %12 = vector.load %arg3[%c2, %c0_8] : memref<8x128xf32, #tpu.memory_space<vmem>>, vector<1x128xf32>
    %13 = vector.broadcast %10 : vector<8x1xf32> to vector<8x128xf32>
    %14 = vector.broadcast %12 : vector<1x128xf32> to vector<8x128xf32>
    %15 = arith.mulf %13, %14 : vector<8x128xf32>
    %16 = arith.addf %9, %15 : vector<8x128xf32>
    %c3 = arith.constant 3 : index
    %c0_9 = arith.constant 0 : index
    %17 = vector.load %arg3[%c3, %c0_9] : memref<8x128xf32, #tpu.memory_space<vmem>>, vector<1x128xf32>
    %18 = vector.broadcast %11 : vector<8x1xf32> to vector<8x128xf32>
    %19 = vector.broadcast %17 : vector<1x128xf32> to vector<8x128xf32>
    %20 = arith.mulf %18, %19 : vector<8x128xf32>
    %21 = arith.addf %16, %20 : vector<8x128xf32>
    %c1 = arith.constant 1 : index
    %c0_10 = arith.constant 0 : index
    %22 = vector.load %arg3[%c1, %c0_10] : memref<8x128xf32, #tpu.memory_space<vmem>>, vector<1x128xf32>
    %23 = vector.broadcast %22 : vector<1x128xf32> to vector<8x128xf32>
    %24 = arith.addf %21, %23 : vector<8x128xf32>
    %cst_11 = arith.constant 0.000000e+00 : f32
    %25 = vector.broadcast %cst_11 : f32 to vector<8x128xf32>
    %26 = arith.maximumf %24, %25 : vector<8x128xf32>
    %c168 = arith.constant 168 : index
    %c0_12 = arith.constant 0 : index
    %27 = vector.load %arg2[%c168, %c0_12] : memref<296x128xf32, #tpu.memory_space<vmem>>, vector<128x64xf32>
    %cst_13 = arith.constant dense<0.000000e+00> : vector<8x64xf32>
    %28 = tpu.matmul %26, %27, %cst_13 {dimension_numbers = #tpu.dot_dimension_numbers<[1], [0], [0], [1], [0, 0, 1, 1], [], []>} : vector<8x128xf32>, vector<128x64xf32>, vector<8x64xf32> -> vector<8x64xf32>
    %c4 = arith.constant 4 : index
    %c0_14 = arith.constant 0 : index
    %29 = vector.load %arg3[%c4, %c0_14] : memref<8x128xf32, #tpu.memory_space<vmem>>, vector<1x64xf32>
    %30 = vector.broadcast %29 : vector<1x64xf32> to vector<8x64xf32>
    %31 = arith.addf %28, %30 : vector<8x64xf32>
    %cst_15 = arith.constant 0.000000e+00 : f32
    %32 = vector.broadcast %cst_15 : f32 to vector<8x64xf32>
    %33 = arith.maximumf %31, %32 : vector<8x64xf32>
    %c5 = arith.constant 5 : index
    %c0_16 = arith.constant 0 : index
    %34 = vector.load %arg3[%c5, %c0_16] : memref<8x128xf32, #tpu.memory_space<vmem>>, vector<1x64xf32>
    %35 = vector.shape_cast %34 : vector<1x64xf32> to vector<1x64xf32>
    %36 = vector.broadcast %35 : vector<1x64xf32> to vector<8x64xf32>
    %cst_17 = arith.constant dense<0.000000e+00> : vector<8x8xf32>
    %37 = tpu.matmul %36, %33, %cst_17 {dimension_numbers = #tpu.dot_dimension_numbers<[1], [1], [0], [0], [0, 0, 1, 0], [], []>} : vector<8x64xf32>, vector<8x64xf32>, vector<8x8xf32> -> vector<8x8xf32>
    %c6 = arith.constant 6 : index
    %c0_18 = arith.constant 0 : index
    %38 = vector.load %arg3[%c6, %c0_18] : memref<8x128xf32, #tpu.memory_space<vmem>>, vector<1x1xf32>
    %39 = vector.extract_strided_slice %37 {offsets = [0, 0], sizes = [1, 8], strides = [1, 1]} : vector<8x8xf32> to vector<1x8xf32>
    %40 = vector.broadcast %38 : vector<1x1xf32> to vector<1x8xf32>
    %41 = arith.addf %39, %40 : vector<1x8xf32>
    %c0_19 = arith.constant 0 : index
    %c0_20 = arith.constant 0 : index
    %42 = vector.load %arg4[%c0_19, %c0_20] : memref<1x8xf32, #tpu.memory_space<vmem>>, vector<1x8xf32>
    tpu.vector_store %arg4[%c0_19, %c0_20], %41 {strides = array<i32>} : memref<1x8xf32, #tpu.memory_space<vmem>>, vector<1x8xf32>,
    return
  }
  func.func @transform_0(%arg0: i32) -> (i32, i32) {
    %c0_i32 = arith.constant 0 : i32
    %c0_i32_0 = arith.constant 0 : i32
    return %arg0, %c0_i32 : i32, i32
  }
  func.func @transform_1(%arg0: i32) -> (i32, i32) {
    %c0_i32 = arith.constant 0 : i32
    %c0_i32_0 = arith.constant 0 : i32
    %c0_i32_1 = arith.constant 0 : i32
    return %c0_i32, %c0_i32_0 : i32, i32
  }
  func.func @transform_2(%arg0: i32) -> (i32, i32) {
    %c0_i32 = arith.constant 0 : i32
    %c0_i32_0 = arith.constant 0 : i32
    %c0_i32_1 = arith.constant 0 : i32
    return %c0_i32, %c0_i32_0 : i32, i32
  }
  func.func @transform_3(%arg0: i32) -> (i32, i32) {
    %c0_i32 = arith.constant 0 : i32
    %c0_i32_0 = arith.constant 0 : i32
    return %arg0, %c0_i32 : i32, i32
  }
}

</mosaic_0001>

<llo_original>
// kernel: tpu_custom_call.1
$region0: #{tpu_custom_call.1}
  #allocation0 [shape = 'u32[]', space=smem, size = 0x4, offset = 0x4, fixed_abs, tag = 'smem constant byte address 0x4 - core index']
  #allocation1 [shape = 'u32[144,128]{1,0:T(1,128)}', space=vmem, size = 0x12000, scoped, tag = 'internal scratch']
  %s0 = inlined_call_operand.hbm [shape: f32[8,40], index: 0, kind: input, shape index: {}]
  %s1 = inlined_call_operand.hbm [shape: f32[296,128], index: 1, kind: input, shape index: {}]
  %s2 = inlined_call_operand.hbm [shape: f32[8,128], index: 2, kind: input, shape index: {}]
  %s3 = inlined_call_operand.hbm [shape: f32[1,8], index: 3, kind: output, shape index: {}]
  %s4 = sld [smem:[#allocation0]]
  $region34: #{tpu_custom_call.1} parent=0
    _
  %s6 = ssub.s32 1, %s4
  %s7 = scalar_select 0, %s6, %s4
  $region1: #{tpu_custom_call.1} parent=0
    #allocation2 [shape = 'u8[4096]{0}', space=vmem, size = 0x1000, scoped, tag = 'input window, operand 0, single buffered']
    #allocation3 [shape = 's32[1]{0}', space=sflag, size = 0x4, scoped, tag = 'scoped memory for tpu_custom_call.1']
    #allocation4 [shape = 's32[1]{0}', space=sflag, size = 0x4, scoped, tag = 'scoped memory for tpu_custom_call.1']
    #allocation5 [shape = 'u8[151552]{0}', space=vmem, size = 0x25000, scoped, tag = 'input window, operand 1, single buffered']
    #allocation6 [shape = 's32[1]{0}', space=sflag, size = 0x4, scoped, tag = 'scoped memory for tpu_custom_call.1']
    #allocation7 [shape = 'u8[4096]{0}', space=vmem, size = 0x1000, scoped, tag = 'input window, operand 2, single buffered']
    #allocation8 [shape = 'u8[512]{0}', space=vmem, size = 0x400, scoped, tag = 'output window, operand 0, single buffered']
    %8 = vsyncpa [#allocation3], 0
    %9 = vsyncpa [#allocation6], 0
    %10 = vsyncpa [#allocation4], 0
    // Predicated region
    $region2: #{tpu_custom_call.1} parent=1 // pred_check
      _
    $region3: #{tpu_custom_call.1} parent=1 // pred_check_branch
      %12 = sbr.rel (0) target = $region5
    $region4: #{tpu_custom_call.1} parent=1 // pred_region
      %s14 = ssub.s32 128, 128
      %15 = vsyncadd [#allocation3], %s14
      %s17 = sshll.u32 [#allocation2], 4
      %s18 = int_to_ptr.vmem [resolvable:$true] %s17
      %20 = dma.hbm_to_vmem [thread:$0]  %s0, 128, %s18, [#allocation3]
    $region5: #{tpu_custom_call.1} parent=1 // pred_fallthru
      _
    // Predicated region
    $region6: #{tpu_custom_call.1} parent=1 // pred_check
      _
    $region7: #{tpu_custom_call.1} parent=1 // pred_check_branch
      %22 = sbr.rel (0) target = $region9
    $region8: #{tpu_custom_call.1} parent=1 // pred_region
      %s24 = ssub.s32 4736, 4736
      %25 = vsyncadd [#allocation6], %s24
      %s26 = sshll.u32 [#allocation5], 4
      %s27 = int_to_ptr.vmem [resolvable:$true] %s26
      %32 = dma.hbm_to_vmem [thread:$0]  %s1, 4736, %s27, [#allocation6], 128, 128, 8
    $region9: #{tpu_custom_call.1} parent=1 // pred_fallthru
      _
    // Predicated region
    $region10: #{tpu_custom_call.1} parent=1 // pred_check
      _
    $region11: #{tpu_custom_call.1} parent=1 // pred_check_branch
      %34 = sbr.rel (0) target = $region13
    $region12: #{tpu_custom_call.1} parent=1 // pred_region
      %s36 = ssub.s32 128, 128
      %37 = vsyncadd [#allocation6], %s36
      %s39 = sshll.u32 [#allocation7], 4
      %s40 = int_to_ptr.vmem [resolvable:$true] %s39
      %42 = dma.hbm_to_vmem [thread:$0]  %s2, 128, %s40, [#allocation6]
    $region13: #{tpu_custom_call.1} parent=1 // pred_fallthru
      _
    // Predicated region
    $region14: #{tpu_custom_call.1} parent=1 // pred_check
      _
    $region15: #{tpu_custom_call.1} parent=1 // pred_check_branch
      %44 = sbr.rel (0) target = $region17
    $region16: #{tpu_custom_call.1} parent=1 // pred_region
      %45 = dma.done [#allocation3], 128
    $region17: #{tpu_custom_call.1} parent=1 // pred_fallthru
      _
    // Predicated region
    $region18: #{tpu_custom_call.1} parent=1 // pred_check
      _
    $region19: #{tpu_custom_call.1} parent=1 // pred_check_branch
      %47 = sbr.rel (0) target = $region21
    $region20: #{tpu_custom_call.1} parent=1 // pred_region
      %48 = dma.done [#allocation6], 4736
    $region21: #{tpu_custom_call.1} parent=1 // pred_fallthru
      _
    // Predicated region
    $region22: #{tpu_custom_call.1} parent=1 // pred_check
      _
    $region23: #{tpu_custom_call.1} parent=1 // pred_check_branch
      %50 = sbr.rel (0) target = $region25
    $region24: #{tpu_custom_call.1} parent=1 // pred_region
      %51 = dma.done [#allocation6], 128
    $region25: #{tpu_custom_call.1} parent=1 // pred_fallthru
      _
    %v52 = vld [vmem:[#allocation2] sm:$0xff]
    %v53 = vld [vmem:[#allocation5] sm:$0xff]
    %v54 = vld [vmem:[#allocation5 + $0x8] sm:$0xff]
    %v55 = vld [vmem:[#allocation5 + $0x10] sm:$0xff]
    %v56 = vld [vmem:[#allocation5 + $0x18] sm:$0xff]
    %v57 = vld [vmem:[#allocation5 + $0x20] sm:$0xff]
    %v58 = vld [vmem:[#allocation7] sm:$0x1]
    %v59 = vlaneseq
    %v60 = vshrl.u32 %v59, 7
    %v61 = vsub.s32 0, %v60
    %v62 = vrot.slane %v58, %v61
    %vm63 = vcmask 326656
    %v65 = vsel %vm63, %v52, 0
    %67 = vmatprep.subr.mxu0 0.0
    %68 = vmatpush1.msra.mxu0 %v53
    %69 = vmatprep.subr.mxu0 0.0
    %70 = vmatpush1.msra.mxu0 %v54
    %71 = vmatprep.subr.mxu0 0.0
    %72 = vmatpush1.msra.mxu0 %v55
    %73 = vmatprep.subr.mxu0 0.0
    %74 = vmatpush1.msra.mxu0 %v56
    %75 = vmatprep.subr.mxu0 0.0
    %76 = vmatpush1.msra.mxu0 %v57
    %77 = vmatprep.subr.mxu0 0.0
    %78 = vmatpush1.msra.mxu0 0.0
    %79 = vmatprep.subr.mxu0 0.0
    %80 = vmatpush1.msra.mxu0 0.0
    %81 = vmatprep.subr.mxu0 0.0
    %82 = vmatpush1.msra.mxu0 0.0
    %83 = vmatprep.subr.mxu0 0.0
    %84 = vmatpush1.msra.mxu0 0.0
    %85 = vmatprep.subr.mxu0 0.0
    %86 = vmatpush1.msra.mxu0 0.0
    %87 = vmatprep.subr.mxu0 0.0
    %88 = vmatpush1.msra.mxu0 0.0
    %89 = vmatprep.subr.mxu0 0.0
    %90 = vmatpush1.msra.mxu0 0.0
    %91 = vmatprep.subr.mxu0 0.0
    %92 = vmatpush1.msra.mxu0 0.0
    %93 = vmatprep.subr.mxu0 0.0
    %94 = vmatpush1.msra.mxu0 0.0
    %95 = vmatprep.subr.mxu0 0.0
    %96 = vmatpush1.msra.mxu0 0.0
    %97 = vmatprep.subr.mxu0 0.0
    %98 = vmatpush1.msra.mxu0 0.0
    %99 = vmatprep.subr.mxu0 0.0
    %100 = vmatpush1.msra.mxu0 0.0
    %101 = vmatprep.subr.mxu0 0.0
    %102 = vmatpush1.msra.mxu0 0.0
    %103 = vmatprep.subr.mxu0 0.0
    %104 = vmatpush1.msra.mxu0 0.0
    %105 = vmatprep.subr.mxu0 0.0
    %106 = vmatpush1.msra.mxu0 0.0
    %107 = vmatprep.subr.mxu0 0.0
    %108 = vmatpush1.msra.mxu0 0.0
    %109 = vmatprep.subr.mxu0 0.0
    %110 = vmatpush1.msra.mxu0 0.0
    %111 = vmatprep.subr.mxu0 0.0
    %112 = vmatpush1.msra.mxu0 0.0
    %113 = vmatprep.subr.mxu0 0.0
    %114 = vmatpush1.msra.mxu0 0.0
    %115 = vmatprep.subr.mxu0 0.0
    %116 = vmatpush1.msra.mxu0 0.0
    %117 = vmatprep.subr.mxu0 0.0
    %118 = vmatpush1.msra.mxu0 0.0
    %119 = vmatprep.subr.mxu0 0.0
    %120 = vmatpush1.msra.mxu0 0.0
    %121 = vmatprep.subr.mxu0 0.0
    %122 = vmatpush1.msra.mxu0 0.0
    %123 = vmatprep.subr.mxu0 0.0
    %124 = vmatpush1.msra.mxu0 0.0
    %125 = vmatprep.subr.mxu0 0.0
    %126 = vmatpush1.msra.mxu0 0.0
    %127 = vmatprep.subr.mxu0 0.0
    %128 = vmatpush1.msra.mxu0 0.0
    %129 = vmatprep.subr.mxu0 0.0
    %130 = vmatpush1.msra.mxu0 0.0
    %131 = vmatprep.mubr.f32.mxu0 0.0
    %132 = vmatmul.mubr.f32.gmra.mrb[0].mxu0 %v65
    %v133 = vpop.f32.mrb[0].mxu0
    %v134 = vadd.f32 %v62, %v133
    %v135 = vpop.f32.mrb[0].mxu0
    %136 = vdwg.mxu0
    %v137 = vmax.f32 %v134, 0.0
    %v138 = vld [vmem:[#allocation5 + $0x28] sm:$0xff]
    %v139 = vld [vmem:[#allocation5 + $0x30] sm:$0xff]
    %v140 = vld [vmem:[#allocation5 + $0x38] sm:$0xff]
    %v141 = vld [vmem:[#allocation5 + $0x40] sm:$0xff]
    %v142 = vld [vmem:[#allocation5 + $0x48] sm:$0xff]
    %v143 = vld [vmem:[#allocation5 + $0x50] sm:$0xff]
    %v144 = vld [vmem:[#allocation5 + $0x58] sm:$0xff]
    %v145 = vld [vmem:[#allocation5 + $0x60] sm:$0xff]
    %v146 = vld [vmem:[#allocation5 + $0x68] sm:$0xff]
    %v147 = vld [vmem:[#allocation5 + $0x70] sm:$0xff]
    %v148 = vld [vmem:[#allocation5 + $0x78] sm:$0xff]
    %v149 = vld [vmem:[#allocation5 + $0x80] sm:$0xff]
    %v150 = vld [vmem:[#allocation5 + $0x88] sm:$0xff]
    %v151 = vld [vmem:[#allocation5 + $0x90] sm:$0xff]
    %v152 = vld [vmem:[#allocation5 + $0x98] sm:$0xff]
    %v153 = vld [vmem:[#allocation5 + $0xa0] sm:$0xff]
    %v154 = vld [vmem:[#allocation7 + $0x2] sm:$0x1]
    %155 = vset.pattern.permute.xlu0 35
    %156 = vperm.xlu0 %155, %v52
    %v157 = vpop.permute.xlu0 %156
    %v159 = vlaneseq
    %v160 = vshrl.u32 %v159, 7
    %v161 = vsub.s32 0, %v160
    %v162 = vrot.slane %v154, %v161
    %v163 = vmul.f32 %v157, %v162
    %164 = vmatprep.subr.mxu0 0.0
    %165 = vmatpush1.msra.mxu0 %v138
    %166 = vmatprep.subr.mxu0 0.0
    %167 = vmatpush1.msra.mxu0 %v139
    %168 = vmatprep.subr.mxu0 0.0
    %169 = vmatpush1.msra.mxu0 %v140
    %170 = vmatprep.subr.mxu0 0.0
    %171 = vmatpush1.msra.mxu0 %v141
    %172 = vmatprep.subr.mxu0 0.0
    %173 = vmatpush1.msra.mxu0 %v142
    %174 = vmatprep.subr.mxu0 0.0
    %175 = vmatpush1.msra.mxu0 %v143
    %176 = vmatprep.subr.mxu0 0.0
    %177 = vmatpush1.msra.mxu0 %v144
    %178 = vmatprep.subr.mxu0 0.0
    %179 = vmatpush1.msra.mxu0 %v145
    %180 = vmatprep.subr.mxu0 0.0
    %181 = vmatpush1.msra.mxu0 %v146
    %182 = vmatprep.subr.mxu0 0.0
    %183 = vmatpush1.msra.mxu0 %v147
    %184 = vmatprep.subr.mxu0 0.0
    %185 = vmatpush1.msra.mxu0 %v148
    %186 = vmatprep.subr.mxu0 0.0
    %187 = vmatpush1.msra.mxu0 %v149
    %188 = vmatprep.subr.mxu0 0.0
    %189 = vmatpush1.msra.mxu0 %v150
    %190 = vmatprep.subr.mxu0 0.0
    %191 = vmatpush1.msra.mxu0 %v151
    %192 = vmatprep.subr.mxu0 0.0
    %193 = vmatpush1.msra.mxu0 %v152
    %194 = vmatprep.subr.mxu0 0.0
    %195 = vmatpush1.msra.mxu0 %v153
    %196 = vmatprep.subr.mxu0 0.0
    %197 = vmatpush1.msra.mxu0 0.0
    %198 = vmatprep.subr.mxu0 0.0
    %199 = vmatpush1.msra.mxu0 0.0
    %200 = vmatprep.subr.mxu0 0.0
    %201 = vmatpush1.msra.mxu0 0.0
    %202 = vmatprep.subr.mxu0 0.0
    %203 = vmatpush1.msra.mxu0 0.0
    %204 = vmatprep.subr.mxu0 0.0
    %205 = vmatpush1.msra.mxu0 0.0
    %206 = vmatprep.subr.mxu0 0.0
    %207 = vmatpush1.msra.mxu0 0.0
    %208 = vmatprep.subr.mxu0 0.0
    %209 = vmatpush1.msra.mxu0 0.0
    %210 = vmatprep.subr.mxu0 0.0
    %211 = vmatpush1.msra.mxu0 0.0
    %212 = vmatprep.subr.mxu0 0.0
    %213 = vmatpush1.msra.mxu0 0.0
    %214 = vmatprep.subr.mxu0 0.0
    %215 = vmatpush1.msra.mxu0 0.0
    %216 = vmatprep.subr.mxu0 0.0
    %217 = vmatpush1.msra.mxu0 0.0
    %218 = vmatprep.subr.mxu0 0.0
    %219 = vmatpush1.msra.mxu0 0.0
    %220 = vmatprep.subr.mxu0 0.0
    %221 = vmatpush1.msra.mxu0 0.0
    %222 = vmatprep.subr.mxu0 0.0
    %223 = vmatpush1.msra.mxu0 0.0
    %224 = vmatprep.subr.mxu0 0.0
    %225 = vmatpush1.msra.mxu0 0.0
    %226 = vmatprep.subr.mxu0 0.0
    %227 = vmatpush1.msra.mxu0 0.0
    %228 = vmatprep.mubr.f32.mxu0 0.0
    %229 = vmatmul.mubr.f32.gmra.mrb[0].mxu0 %v137
    %v230 = vpop.f32.mrb[0].mxu0
    %v231 = vadd.f32 %v163, %v230
    %v232 = vpop.f32.mrb[0].mxu0
    %233 = vdwg.mxu0
    %v234 = vld [vmem:[#allocation7 + $0x3] sm:$0x1]
    %235 = vset.pattern.permute.xlu0 36
    %236 = vperm.xlu0 %235, %v52
    %v237 = vpop.permute.xlu0 %236
    %v239 = vlaneseq
    %v240 = vshrl.u32 %v239, 7
    %v241 = vsub.s32 0, %v240
    %v242 = vrot.slane %v234, %v241
    %v243 = vmul.f32 %v237, %v242
    %v244 = vadd.f32 %v231, %v243
    %v245 = vld [vmem:[#allocation7 + $0x1] sm:$0x1]
    %v246 = vlaneseq
    %v247 = vshrl.u32 %v246, 7
    %v248 = vsub.s32 0, %v247
    %v249 = vrot.slane %v245, %v248
    %v250 = vadd.f32 %v244, %v249
    %v251 = vmax.f32 %v250, 0.0
    %v252 = vld [vmem:[#allocation5 + $0xa8] sm:$0xff]
    %v253 = vld [vmem:[#allocation5 + $0xb0] sm:$0xff]
    %v254 = vld [vmem:[#allocation5 + $0xb8] sm:$0xff]
    %v255 = vld [vmem:[#allocation5 + $0xc0] sm:$0xff]
    %v256 = vld [vmem:[#allocation5 + $0xc8] sm:$0xff]
    %v257 = vld [vmem:[#allocation5 + $0xd0] sm:$0xff]
    %v258 = vld [vmem:[#allocation5 + $0xd8] sm:$0xff]
    %v259 = vld [vmem:[#allocation5 + $0xe0] sm:$0xff]
    %v260 = vld [vmem:[#allocation5 + $0xe8] sm:$0xff]
    %v261 = vld [vmem:[#allocation5 + $0xf0] sm:$0xff]
    %v262 = vld [vmem:[#allocation5 + $0xf8] sm:$0xff]
    %v263 = vld [vmem:[#allocation5 + $0x100] sm:$0xff]
    %v264 = vld [vmem:[#allocation5 + $0x108] sm:$0xff]
    %v265 = vld [vmem:[#allocation5 + $0x110] sm:$0xff]
    %v266 = vld [vmem:[#allocation5 + $0x118] sm:$0xff]
    %v267 = vld [vmem:[#allocation5 + $0x120] sm:$0xff]
    %v268 = vld [vmem:[#allocation7 + $0x4] sm:$0x1]
    %v269 = vlaneseq
    %v270 = vshrl.u32 %v269, 7
    %v271 = vsub.s32 0, %v270
    %v272 = vrot.slane %v268, %v271
    %273 = vmatprep.subr.mxu0 0.0
    %274 = vmatpush1.msra.mxu0 %v252
    %275 = vmatprep.subr.mxu0 0.0
    %276 = vmatpush1.msra.mxu0 %v253
    %277 = vmatprep.subr.mxu0 0.0
    %278 = vmatpush1.msra.mxu0 %v254
    %279 = vmatprep.subr.mxu0 0.0
    %280 = vmatpush1.msra.mxu0 %v255
    %281 = vmatprep.subr.mxu0 0.0
    %282 = vmatpush1.msra.mxu0 %v256
    %283 = vmatprep.subr.mxu0 0.0
    %284 = vmatpush1.msra.mxu0 %v257
    %285 = vmatprep.subr.mxu0 0.0
    %286 = vmatpush1.msra.mxu0 %v258
    %287 = vmatprep.subr.mxu0 0.0
    %288 = vmatpush1.msra.mxu0 %v259
    %289 = vmatprep.subr.mxu0 0.0
    %290 = vmatpush1.msra.mxu0 %v260
    %291 = vmatprep.subr.mxu0 0.0
    %292 = vmatpush1.msra.mxu0 %v261
    %293 = vmatprep.subr.mxu0 0.0
    %294 = vmatpush1.msra.mxu0 %v262
    %295 = vmatprep.subr.mxu0 0.0
    %296 = vmatpush1.msra.mxu0 %v263
    %297 = vmatprep.subr.mxu0 0.0
    %298 = vmatpush1.msra.mxu0 %v264
    %299 = vmatprep.subr.mxu0 0.0
    %300 = vmatpush1.msra.mxu0 %v265
    %301 = vmatprep.subr.mxu0 0.0
    %302 = vmatpush1.msra.mxu0 %v266
    %303 = vmatprep.subr.mxu0 0.0
    %304 = vmatpush1.msra.mxu0 %v267
    %305 = vmatprep.subr.mxu0 0.0
    %306 = vmatpush1.msra.mxu0 0.0
    %307 = vmatprep.subr.mxu0 0.0
    %308 = vmatpush1.msra.mxu0 0.0
    %309 = vmatprep.subr.mxu0 0.0
    %310 = vmatpush1.msra.mxu0 0.0
    %311 = vmatprep.subr.mxu0 0.0
    %312 = vmatpush1.msra.mxu0 0.0
    %313 = vmatprep.subr.mxu0 0.0
    %314 = vmatpush1.msra.mxu0 0.0
    %315 = vmatprep.subr.mxu0 0.0
    %316 = vmatpush1.msra.mxu0 0.0
    %317 = vmatprep.subr.mxu0 0.0
    %318 = vmatpush1.msra.mxu0 0.0
    %319 = vmatprep.subr.mxu0 0.0
    %320 = vmatpush1.msra.mxu0 0.0
    %321 = vmatprep.subr.mxu0 0.0
    %322 = vmatpush1.msra.mxu0 0.0
    %323 = vmatprep.subr.mxu0 0.0
    %324 = vmatpush1.msra.mxu0 0.0
    %325 = vmatprep.subr.mxu0 0.0
    %326 = vmatpush1.msra.mxu0 0.0
    %327 = vmatprep.subr.mxu0 0.0
    %328 = vmatpush1.msra.mxu0 0.0
    %329 = vmatprep.subr.mxu0 0.0
    %330 = vmatpush1.msra.mxu0 0.0
    %331 = vmatprep.subr.mxu0 0.0
    %332 = vmatpush1.msra.mxu0 0.0
    %333 = vmatprep.subr.mxu0 0.0
    %334 = vmatpush1.msra.mxu0 0.0
    %335 = vmatprep.subr.mxu0 0.0
    %336 = vmatpush1.msra.mxu0 0.0
    %337 = vmatprep.mubr.f32.mxu0 0.0
    %338 = vmatmul.mubr.f32.gmra.mrb[0].mxu0 %v251
    %v339 = vpop.f32.mrb[0].mxu0
    %v340 = vadd.f32 %v272, %v339
    %v341 = vpop.f32.mrb[0].mxu0
    %342 = vdwg.mxu0
    %v343 = vmax.f32 %v340, 0.0
    %v344 = vld [vmem:[#allocation7 + $0x5] sm:$0x1]
    %v345 = vlaneseq
    %v346 = vshrl.u32 %v345, 7
    %v347 = vsub.s32 0, %v346
    %v348 = vrot.slane %v344, %v347
    %vm349 = vcmask 523264
    %v351 = vsel %vm349, %v348, 0
    %v354 = vsel %vm349, %v343, 0
    %356 = vmatprep.subr.mxu0 0.0
    %357 = vmatpush1.xpose.msra.mxu0 %v354
    %358 = vmatprep.subr.mxu0 0.0
    %359 = vmatpush1.xpose.msra.mxu0 0.0
    %360 = vmatprep.subr.mxu0 0.0
    %361 = vmatpush1.xpose.msra.mxu0 0.0
    %362 = vmatprep.subr.mxu0 0.0
    %363 = vmatpush1.xpose.msra.mxu0 0.0
    %364 = vmatprep.subr.mxu0 0.0
    %365 = vmatpush1.xpose.msra.mxu0 0.0
    %366 = vmatprep.subr.mxu0 0.0
    %367 = vmatpush1.xpose.msra.mxu0 0.0
    %368 = vmatprep.subr.mxu0 0.0
    %369 = vmatpush1.xpose.msra.mxu0 0.0
    %370 = vmatprep.subr.mxu0 0.0
    %371 = vmatpush1.xpose.msra.mxu0 0.0
    %372 = vmatprep.subr.mxu0 0.0
    %373 = vmatpush1.xpose.msra.mxu0 0.0
    %374 = vmatprep.subr.mxu0 0.0
    %375 = vmatpush1.xpose.msra.mxu0 0.0
    %376 = vmatprep.subr.mxu0 0.0
    %377 = vmatpush1.xpose.msra.mxu0 0.0
    %378 = vmatprep.subr.mxu0 0.0
    %379 = vmatpush1.xpose.msra.mxu0 0.0
    %380 = vmatprep.subr.mxu0 0.0
    %381 = vmatpush1.xpose.msra.mxu0 0.0
    %382 = vmatprep.subr.mxu0 0.0
    %383 = vmatpush1.xpose.msra.mxu0 0.0
    %384 = vmatprep.subr.mxu0 0.0
    %385 = vmatpush1.xpose.msra.mxu0 0.0
    %386 = vmatprep.subr.mxu0 0.0
    %387 = vmatpush1.xpose.msra.mxu0 0.0
    %388 = vmatprep.subr.mxu0 0.0
    %389 = vmatpush1.xpose.msra.mxu0 0.0
    %390 = vmatprep.subr.mxu0 0.0
    %391 = vmatpush1.xpose.msra.mxu0 0.0
    %392 = vmatprep.subr.mxu0 0.0
    %393 = vmatpush1.xpose.msra.mxu0 0.0
    %394 = vmatprep.subr.mxu0 0.0
    %395 = vmatpush1.xpose.msra.mxu0 0.0
    %396 = vmatprep.subr.mxu0 0.0
    %397 = vmatpush1.xpose.msra.mxu0 0.0
    %398 = vmatprep.subr.mxu0 0.0
    %399 = vmatpush1.xpose.msra.mxu0 0.0
    %400 = vmatprep.subr.mxu0 0.0
    %401 = vmatpush1.xpose.msra.mxu0 0.0
    %402 = vmatprep.subr.mxu0 0.0
    %403 = vmatpush1.xpose.msra.mxu0 0.0
    %404 = vmatprep.subr.mxu0 0.0
    %405 = vmatpush1.xpose.msra.mxu0 0.0
    %406 = vmatprep.subr.mxu0 0.0
    %407 = vmatpush1.xpose.msra.mxu0 0.0
    %408 = vmatprep.subr.mxu0 0.0
    %409 = vmatpush1.xpose.msra.mxu0 0.0
    %410 = vmatprep.subr.mxu0 0.0
    %411 = vmatpush1.xpose.msra.mxu0 0.0
    %412 = vmatprep.subr.mxu0 0.0
    %413 = vmatpush1.xpose.msra.mxu0 0.0
    %414 = vmatprep.subr.mxu0 0.0
    %415 = vmatpush1.xpose.msra.mxu0 0.0
    %416 = vmatprep.subr.mxu0 0.0
    %417 = vmatpush1.xpose.msra.mxu0 0.0
    %418 = vmatprep.subr.mxu0 0.0
    %419 = vmatpush1.xpose.msra.mxu0 0.0
    %420 = vmatprep.mubr.f32.mxu0 0.0
    %421 = vmatmul.mubr.f32.gmra.mrb[0].mxu0 %v351
    %v422 = vpop.f32.mrb[0].mxu0
    %v423 = vadd.f32 0.0, %v422
    %v424 = vpop.f32.mrb[0].mxu0
    %425 = vdwg.mxu0
    %v426 = vld [vmem:[#allocation7 + $0x6] sm:$0x1]
    %428 = vset.pattern.permute.xlu0 0
    %429 = vperm.xlu0 %428, %v426
    %v430 = vpop.permute.xlu0 %429
    %v432 = vadd.f32 %v423, %v430
    %vm433 = vcmask 57344
    %434 = vst.msk [vmem:[#allocation8] sm:$0x1] %vm433, %v432
    // Predicated region
    $region26: #{tpu_custom_call.1} parent=1 // pred_check
      _
    $region27: #{tpu_custom_call.1} parent=1 // pred_check_branch
      %436 = sbr.rel (0) target = $region29
    $region28: #{tpu_custom_call.1} parent=1 // pred_region
      %s438 = ssub.s32 16, 16
      %439 = vsyncadd [#allocation4], %s438
      %s441 = sshll.u32 [#allocation8], 4
      %s442 = int_to_ptr.vmem [resolvable:$true] %s441
      %444 = dma.vmem_to_hbm [thread:$0]  %s442, 16, %s3, [#allocation4]
    $region29: #{tpu_custom_call.1} parent=1 // pred_fallthru
      _
    // Predicated region
    $region30: #{tpu_custom_call.1} parent=1 // pred_check
      _
    $region31: #{tpu_custom_call.1} parent=1 // pred_check_branch
      %446 = sbr.rel (0) target = $region33
    $region32: #{tpu_custom_call.1} parent=1 // pred_region
      %447 = dma.done [#allocation4], 16
    $region33: #{tpu_custom_call.1} parent=1 // pred_fallthru
      _
    %448 = vsyncpa [#allocation3], 1
    %449 = vsyncpa [#allocation6], 1
    %450 = vsyncpa [#allocation4], 1

</llo_original>
